<compile_context>
chip_gen: v7x
topology: tpu7x:2x2x1
jax: 0.10.0
libtpu: 0.0.40
codegen_flags: <defaults>
</compile_context>

<pallas_src>
import jax
import jax.numpy as jnp
from jax import lax
from jax.experimental import pallas as pl
from jax.experimental.pallas import tpu as pltpu


# ----------------------------------------------------------------------------
# Pallas kernel factory: valid (stride-1) conv on an optionally zero-padded
# input + fused BN shift.  All shape parameters are static (closure).
# ----------------------------------------------------------------------------
def _make_conv_bn_kernel(N, Cin, Cout, Hg, Wg, K, pad):
    Hp, Wp = Hg + 2 * pad, Wg + 2 * pad          # padded plane
    Ho, Wo = Hp - K + 1, Wp - K + 1              # output spatial
    L = Hp * Wp                                  # flattened padded-plane length
    Sw = Ho * Wp                                 # "wide" spatial (has wrap garbage)
    KK = K * K
    NCin = N * Cin
    use_pad = pad > 0
    use_sel = Wo != Wp                           # 1x1 conv has no garbage columns

    def kernel(*refs):
        it = iter(refs)
        x_ref = next(it)                         # (N*Cin, Hg*Wg)
        w_ref = next(it)                         # (N*Cout, KK*N*Cin) block-diag, BN scale folded
        p_ref = next(it) if use_pad else None    # (Hg*Wg, Hp*Wp) 0/1 pad scatter
        sel_ref = next(it) if use_sel else None  # (Sw, Ho*Wo) 0/1 column selection
        shift_ref = next(it)                     # (N*Cout, 1) BN shift
        o_ref = next(it)                         # (N*Cout, Ho*Wo)
        pw_ref = next(it)                        # (KK*N*Cin, Sw) im2col patches
        xf_ref = next(it) if use_pad else None   # (N*Cin, Hp*Wp) padded planes

        # -- stage 1: zero-padded planes via scatter matmul (MXU), pad>0 only --
        if use_pad:
            xf_ref[...] = jnp.dot(x_ref[...], p_ref[...],
                                  preferred_element_type=jnp.float32)
            src = xf_ref
        else:
            src = x_ref                          # no staging / zero-fill pass

        # -- stage 2: im2col — one aligned (N*Cin)-row "wide" copy per tap ----
        # pw row (kh*K+kw)*N*Cin + n*Cin + cin  <-  src[n*Cin+cin, off : off+Sw]
        for kh in range(K):
            for kw in range(K):
                t = kh * K + kw
                off = kh * Wp + kw
                valid = min(Sw, L - off)         # clamp: never read past src
                pw_ref[t * NCin:(t + 1) * NCin, 0:valid] = (
                    src[:, off:off + valid].astype(jnp.float32))
                if valid < Sw:                   # keep dropped cols finite
                    pw_ref[t * NCin:(t + 1) * NCin, valid:Sw] = jnp.zeros(
                        (NCin, Sw - valid), jnp.float32)

        # -- stage 3: single batched MXU matmul (BN scale already in w_ref) ---
        res = jnp.dot(w_ref[...], pw_ref[...],
                      preferred_element_type=jnp.float32)       # (N*Cout, Sw)

        # -- stage 4: compaction matmul drops wrap columns; one aligned store -
        if use_sel:
            res = jnp.dot(res, sel_ref[...],
                          preferred_element_type=jnp.float32)   # (N*Cout, Ho*Wo)
        o_ref[...] = (res + shift_ref[...]).astype(o_ref.dtype)

    return kernel


def conv_bn_pallas(x_nchw, w_blk, shift_full, pmat, sel, *, k, pad):
    """Valid conv (stride 1) on a `pad`-zero-padded NCHW input + BN affine.

    x_nchw     : (N, Cin, H, W)
    w_blk      : (N*Cout, K*K*N*Cin) block-diagonal weight, BN scale folded in
    shift_full : (N*Cout, 1)
    pmat       : (Hg*Wg, Hp*Wp) 0/1 pad scatter (or None when pad == 0)
    sel        : (Sw, Ho*Wo) 0/1 column selection (or None for 1x1 conv)
    returns    : (N, Cout, Ho, Wo) NCHW
    """
    N, Cin, Hg, Wg = x_nchw.shape
    NCout = w_blk.shape[0]
    Cout = NCout // N
    Hp, Wp = Hg + 2 * pad, Wg + 2 * pad
    Ho, Wo = Hp - k + 1, Wp - k + 1
    Sw = Ho * Wp
    KK = k * k
    NCin = N * Cin

    x2 = x_nchw.reshape(NCin, Hg * Wg)           # bitcast, no data movement

    operands = [x2, w_blk]
    in_specs = [pl.BlockSpec((NCin, Hg * Wg), lambda i: (0, 0)),
                pl.BlockSpec((NCout, KK * NCin), lambda i: (0, 0))]
    if pad > 0:
        operands.append(pmat)
        in_specs.append(pl.BlockSpec((Hg * Wg, Hp * Wp), lambda i: (0, 0)))
    if Wo != Wp:
        operands.append(sel)
        in_specs.append(pl.BlockSpec((Sw, Ho * Wo), lambda i: (0, 0)))
    operands.append(shift_full)
    in_specs.append(pl.BlockSpec((NCout, 1), lambda i: (0, 0)))

    scratch = [pltpu.VMEM((KK * NCin, Sw), jnp.float32)]        # im2col patches
    if pad > 0:
        scratch.append(pltpu.VMEM((NCin, Hp * Wp), jnp.float32))  # padded planes

    kernel = _make_conv_bn_kernel(N, Cin, Cout, Hg, Wg, k, pad)
    out_flat = pl.pallas_call(
        kernel,
        out_shape=jax.ShapeDtypeStruct((NCout, Ho * Wo), x_nchw.dtype),
        grid=(1,),                               # whole (tiny) batch in one step
        in_specs=in_specs,
        out_specs=pl.BlockSpec((NCout, Ho * Wo), lambda i: (0, 0)),
        scratch_shapes=scratch,
        compiler_params=pltpu.CompilerParams(
            dimension_semantics=("arbitrary",)),
    )(*operands)

    return out_flat.reshape(N, Cout, Ho, Wo)     # bitcast back to NCHW


# ----------------------------------------------------------------------------
# Regressor (parameter setup + branch selection are plain-JAX glue).
# ----------------------------------------------------------------------------
class RegressorPallas:
    def __init__(self, guided_size, hint_size, guided_channels, hint_channels,
                 key):
        self.guided_size = guided_size
        self.hint_size = hint_size
        self.guided_channels = guided_channels
        self.hint_channels = hint_channels
        eps = 1e-5

        kw_key, g_key, b_key = jax.random.split(key, 3)

        if hint_size < guided_size or (hint_channels != guided_channels
                                       and hint_size == guided_size):
            self.mode = "conv"
            k = guided_size - hint_size + 1
            self.k, self.pad = k, 0
            # PyTorch Conv2d weight: (Cout, Cin, k, k), bias=False (norm layer)
            w = 0.1 * jax.random.normal(
                kw_key, (hint_channels, guided_channels, k, k), jnp.float32)
            self.w_oihw = w
        elif hint_size == guided_size and hint_channels == guided_channels:
            self.mode = "identity"
            self.k, self.pad = 0, 0
        else:  # hint_size > guided_size
            self.mode = "conv_transpose"
            k = hint_size - guided_size + 1
            self.k, self.pad = k, k - 1
            # PyTorch ConvTranspose2d weight: (Cin, Cout, k, k), bias=False
            w_t = 0.1 * jax.random.normal(
                kw_key, (guided_channels, hint_channels, k, k), jnp.float32)
            # stride-1/pad-0 transpose conv == conv(flip kernel, swap io) on
            # an input zero-padded by k-1.
            self.w_oihw = jnp.transpose(jnp.flip(w_t, axis=(2, 3)),
                                        (1, 0, 2, 3))          # (Cout, Cin, k, k)

        if self.mode != "identity":
            # flat weight for the im2col matmul: rows=cout, cols=(kh, kw, cin)
            w_mat = jnp.transpose(self.w_oihw, (0, 2, 3, 1)).reshape(
                hint_channels, self.k * self.k * guided_channels)

            gamma = 1.0 + 0.1 * jax.random.normal(
                g_key, (hint_channels,), jnp.float32)
            beta = 0.1 * jax.random.normal(
                b_key, (hint_channels,), jnp.float32)
            running_mean = jnp.zeros((hint_channels,), jnp.float32)
            running_var = jnp.ones((hint_channels,), jnp.float32)
            scale = gamma / jnp.sqrt(running_var + eps)
            shift = beta - running_mean * scale
            self.scale = scale.reshape(hint_channels, 1).astype(jnp.float32)
            self.shift = shift.reshape(hint_channels, 1).astype(jnp.float32)
            # Fold BN scale into the conv weight (one-time transform).
            self.w_mat_scaled = (w_mat * self.scale).astype(jnp.float32)
            self._consts = {}                    # per-(N,Hg,Wg) constant cache

    def _call_constants(self, N, Hg, Wg):
        """Block-diagonal batched weight + 0/1 pad/selection matmuls (cached)."""
        key = (N, Hg, Wg)
        if key in self._consts:
            return self._consts[key]
        Cin, Cout, K, pad = (self.guided_channels, self.hint_channels,
                             self.k, self.pad)
        Hp, Wp = Hg + 2 * pad, Wg + 2 * pad
        Ho, Wo = Hp - K + 1, Wp - K + 1
        KK, NCin, Sw = K * K, N * Cin, Ho * Wp

        # W_blk[n*Cout+o, t*N*Cin + m*Cin + c] = w_scaled[o, t*Cin + c] * delta(n,m)
        w3 = self.w_mat_scaled.reshape(Cout, KK, Cin)
        w_blk = jnp.einsum("okc,nm->nokmc", w3,
                           jnp.eye(N, dtype=jnp.float32)
                           ).reshape(N * Cout, KK * NCin)
        shift_full = jnp.tile(self.shift, (N, 1))

        pmat = None
        if pad > 0:                              # 0/1 zero-pad scatter matrix
            rows = jnp.arange(Hg * Wg)
            cols = (rows // Wg + pad) * Wp + (rows % Wg + pad)
            pmat = jnp.zeros((Hg * Wg, Hp * Wp), jnp.float32
                             ).at[rows, cols].set(1.0)
        sel = None
        if Wo != Wp:                             # 0/1 garbage-column dropper
            srows = (jnp.arange(Ho)[:, None] * Wp
                     + jnp.arange(Wo)[None, :]).reshape(-1)
            sel = jnp.zeros((Sw, Ho * Wo), jnp.float32
                            ).at[srows, jnp.arange(Ho * Wo)].set(1.0)

        consts = (w_blk, shift_full, pmat, sel)
        self._consts[key] = consts
        return consts

    def __call__(self, x_nchw):
        if self.mode == "identity":
            return x_nchw
        N, _, Hg, Wg = x_nchw.shape
        w_blk, shift_full, pmat, sel = self._call_constants(N, Hg, Wg)
        return conv_bn_pallas(x_nchw, w_blk, shift_full, pmat, sel,
                              k=self.k, pad=self.pad)


# ----------------------------------------------------------------------------
# Pure-JAX reference (for correctness check only).
# ----------------------------------------------------------------------------
def _reference(model, x_nchw):
    if model.mode == "identity":
        return x_nchw
    p = model.pad
    y = lax.conv_general_dilated(
        x_nchw, model.w_oihw, window_strides=(1, 1),
        padding=[(p, p), (p, p)],
        dimension_numbers=("NCHW", "OIHW", "NCHW"))
    return (y * model.scale.reshape(1, -1, 1, 1)
            + model.shift.reshape(1, -1, 1, 1))


if __name__ == "__main__":
    key = jax.random.PRNGKey(0)
    k_w1, k_w2, k_w3, k_x1, k_x2 = jax.random.split(key, 5)

    # Branch 1a: downsampling conv (guided 16 -> hint 12, channels 4 -> 8), K=5
    reg_conv = RegressorPallas(guided_size=16, hint_size=12,
                               guided_channels=4, hint_channels=8, key=k_w1)
    x1 = jax.random.normal(k_x1, (2, 4, 16, 16), jnp.float32)   # NCHW
    y1 = jax.block_until_ready(reg_conv(x1))
    assert y1.shape == (2, 8, 12, 12), y1.shape
    assert jnp.allclose(y1, _reference(reg_conv, x1), atol=1e-3, rtol=1e-3)

    # Branch 1b: same size, different channels -> 1x1 conv (K=1)
    reg_1x1 = RegressorPallas(guided_size=16, hint_size=16,
                              guided_channels=4, hint_channels=8, key=k_w3)
    y1b = jax.block_until_ready(reg_1x1(x1))
    assert y1b.shape == (2, 8, 16, 16), y1b.shape
    assert jnp.allclose(y1b, _reference(reg_1x1, x1), atol=1e-3, rtol=1e-3)

    # Branch 3: transposed conv (guided 8 -> hint 12, channels 4 -> 8), K=5
    reg_tconv = RegressorPallas(guided_size=8, hint_size=12,
                                guided_channels=4, hint_channels=8, key=k_w2)
    x2 = jax.random.normal(k_x2, (2, 4, 8, 8), jnp.float32)     # NCHW
    y2 = jax.block_until_ready(reg_tconv(x2))
    assert y2.shape == (2, 8, 12, 12), y2.shape
    assert jnp.allclose(y2, _reference(reg_tconv, x2), atol=1e-3, rtol=1e-3)

    # Branch 2: identity
    reg_id = RegressorPallas(guided_size=16, hint_size=16,
                             guided_channels=4, hint_channels=4, key=k_w1)
    y3 = jax.block_until_ready(reg_id(x1))
    assert jnp.array_equal(y3, x1)

    print("KERNEL_OK")
</pallas_src>

<mosaic_0001>
module attributes {stable_mosaic.version = 11 : i64} {
  func.func @kernel(%arg0: i32, %arg1: memref<8x256xf32, #tpu.memory_space<vmem>>, %arg2: memref<16x200xf32, #tpu.memory_space<vmem>>, %arg3: memref<192x144xf32, #tpu.memory_space<vmem>>, %arg4: memref<16x1xf32, #tpu.memory_space<vmem>>, %arg5: memref<16x144xf32, #tpu.memory_space<vmem>>, %arg6: memref<200x192xf32, #tpu.memory_space<vmem>>) attributes {dimension_semantics = [#tpu.dimension_semantics<arbitrary>], iteration_bounds = array<i64: 1>, scalar_prefetch = 0 : i64, scratch_operands = 1 : i64, tpu.core_type = #tpu.core_type<tc>, window_params = [{pipeline_mode = #tpu.pipeline_mode<synchronous>, transform_indices = @transform_0, window_bounds = array<i64: 8, 256>}, {pipeline_mode = #tpu.pipeline_mode<synchronous>, transform_indices = @transform_1, window_bounds = array<i64: 16, 200>}, {pipeline_mode = #tpu.pipeline_mode<synchronous>, transform_indices = @transform_2, window_bounds = array<i64: 192, 144>}, {pipeline_mode = #tpu.pipeline_mode<synchronous>, transform_indices = @transform_3, window_bounds = array<i64: 16, 1>}, {pipeline_mode = #tpu.pipeline_mode<synchronous>, transform_indices = @transform_4, window_bounds = array<i64: 16, 144>}]} {
    %c0 = arith.constant 0 : index
    %c0_0 = arith.constant 0 : index
    %0 = vector.load %arg1[%c0, %c0_0] : memref<8x256xf32, #tpu.memory_space<vmem>>, vector<8x192xf32>
    %c0_1 = arith.constant 0 : index
    %c0_2 = arith.constant 0 : index
    %1 = vector.load %arg6[%c0_1, %c0_2] : memref<200x192xf32, #tpu.memory_space<vmem>>, vector<8x192xf32>
    tpu.vector_store %arg6[%c0_1, %c0_2], %0 {strides = array<i32>} : memref<200x192xf32, #tpu.memory_space<vmem>>, vector<8x192xf32>,
    %c0_3 = arith.constant 0 : index
    %c1 = arith.constant 1 : index
    %2 = vector.load %arg1[%c0_3, %c1] : memref<8x256xf32, #tpu.memory_space<vmem>>, vector<8x192xf32>
    %c8 = arith.constant 8 : index
    %c0_4 = arith.constant 0 : index
    %3 = vector.load %arg6[%c8, %c0_4] : memref<200x192xf32, #tpu.memory_space<vmem>>, vector<8x192xf32>
    tpu.vector_store %arg6[%c8, %c0_4], %2 {strides = array<i32>} : memref<200x192xf32, #tpu.memory_space<vmem>>, vector<8x192xf32>,
    %c0_5 = arith.constant 0 : index
    %c2 = arith.constant 2 : index
    %4 = vector.load %arg1[%c0_5, %c2] : memref<8x256xf32, #tpu.memory_space<vmem>>, vector<8x192xf32>
    %c16 = arith.constant 16 : index
    %c0_6 = arith.constant 0 : index
    %5 = vector.load %arg6[%c16, %c0_6] : memref<200x192xf32, #tpu.memory_space<vmem>>, vector<8x192xf32>
    tpu.vector_store %arg6[%c16, %c0_6], %4 {strides = array<i32>} : memref<200x192xf32, #tpu.memory_space<vmem>>, vector<8x192xf32>,
    %c0_7 = arith.constant 0 : index
    %c3 = arith.constant 3 : index
    %6 = vector.load %arg1[%c0_7, %c3] : memref<8x256xf32, #tpu.memory_space<vmem>>, vector<8x192xf32>
    %c24 = arith.constant 24 : index
    %c0_8 = arith.constant 0 : index
    %7 = vector.load %arg6[%c24, %c0_8] : memref<200x192xf32, #tpu.memory_space<vmem>>, vector<8x192xf32>
    tpu.vector_store %arg6[%c24, %c0_8], %6 {strides = array<i32>} : memref<200x192xf32, #tpu.memory_space<vmem>>, vector<8x192xf32>,
    %c0_9 = arith.constant 0 : index
    %c4 = arith.constant 4 : index
    %8 = vector.load %arg1[%c0_9, %c4] : memref<8x256xf32, #tpu.memory_space<vmem>>, vector<8x192xf32>
    %c32 = arith.constant 32 : index
    %c0_10 = arith.constant 0 : index
    %9 = vector.load %arg6[%c32, %c0_10] : memref<200x192xf32, #tpu.memory_space<vmem>>, vector<8x192xf32>
    tpu.vector_store %arg6[%c32, %c0_10], %8 {strides = array<i32>} : memref<200x192xf32, #tpu.memory_space<vmem>>, vector<8x192xf32>,
    %c0_11 = arith.constant 0 : index
    %c16_12 = arith.constant 16 : index
    %10 = vector.load %arg1[%c0_11, %c16_12] : memref<8x256xf32, #tpu.memory_space<vmem>>, vector<8x192xf32>
    %c40 = arith.constant 40 : index
    %c0_13 = arith.constant 0 : index
    %11 = vector.load %arg6[%c40, %c0_13] : memref<200x192xf32, #tpu.memory_space<vmem>>, vector<8x192xf32>
    tpu.vector_store %arg6[%c40, %c0_13], %10 {strides = array<i32>} : memref<200x192xf32, #tpu.memory_space<vmem>>, vector<8x192xf32>,
    %c0_14 = arith.constant 0 : index
    %c17 = arith.constant 17 : index
    %12 = vector.load %arg1[%c0_14, %c17] : memref<8x256xf32, #tpu.memory_space<vmem>>, vector<8x192xf32>
    %c48 = arith.constant 48 : index
    %c0_15 = arith.constant 0 : index
    %13 = vector.load %arg6[%c48, %c0_15] : memref<200x192xf32, #tpu.memory_space<vmem>>, vector<8x192xf32>
    tpu.vector_store %arg6[%c48, %c0_15], %12 {strides = array<i32>} : memref<200x192xf32, #tpu.memory_space<vmem>>, vector<8x192xf32>,
    %c0_16 = arith.constant 0 : index
    %c18 = arith.constant 18 : index
    %14 = vector.load %arg1[%c0_16, %c18] : memref<8x256xf32, #tpu.memory_space<vmem>>, vector<8x192xf32>
    %c56 = arith.constant 56 : index
    %c0_17 = arith.constant 0 : index
    %15 = vector.load %arg6[%c56, %c0_17] : memref<200x192xf32, #tpu.memory_space<vmem>>, vector<8x192xf32>
    tpu.vector_store %arg6[%c56, %c0_17], %14 {strides = array<i32>} : memref<200x192xf32, #tpu.memory_space<vmem>>, vector<8x192xf32>,
    %c0_18 = arith.constant 0 : index
    %c19 = arith.constant 19 : index
    %16 = vector.load %arg1[%c0_18, %c19] : memref<8x256xf32, #tpu.memory_space<vmem>>, vector<8x192xf32>
    %c64 = arith.constant 64 : index
    %c0_19 = arith.constant 0 : index
    %17 = vector.load %arg6[%c64, %c0_19] : memref<200x192xf32, #tpu.memory_space<vmem>>, vector<8x192xf32>
    tpu.vector_store %arg6[%c64, %c0_19], %16 {strides = array<i32>} : memref<200x192xf32, #tpu.memory_space<vmem>>, vector<8x192xf32>,
    %c0_20 = arith.constant 0 : index
    %c20 = arith.constant 20 : index
    %18 = vector.load %arg1[%c0_20, %c20] : memref<8x256xf32, #tpu.memory_space<vmem>>, vector<8x192xf32>
    %c72 = arith.constant 72 : index
    %c0_21 = arith.constant 0 : index
    %19 = vector.load %arg6[%c72, %c0_21] : memref<200x192xf32, #tpu.memory_space<vmem>>, vector<8x192xf32>
    tpu.vector_store %arg6[%c72, %c0_21], %18 {strides = array<i32>} : memref<200x192xf32, #tpu.memory_space<vmem>>, vector<8x192xf32>,
    %c0_22 = arith.constant 0 : index
    %c32_23 = arith.constant 32 : index
    %20 = vector.load %arg1[%c0_22, %c32_23] : memref<8x256xf32, #tpu.memory_space<vmem>>, vector<8x192xf32>
    %c80 = arith.constant 80 : index
    %c0_24 = arith.constant 0 : index
    %21 = vector.load %arg6[%c80, %c0_24] : memref<200x192xf32, #tpu.memory_space<vmem>>, vector<8x192xf32>
    tpu.vector_store %arg6[%c80, %c0_24], %20 {strides = array<i32>} : memref<200x192xf32, #tpu.memory_space<vmem>>, vector<8x192xf32>,
    %c0_25 = arith.constant 0 : index
    %c33 = arith.constant 33 : index
    %22 = vector.load %arg1[%c0_25, %c33] : memref<8x256xf32, #tpu.memory_space<vmem>>, vector<8x192xf32>
    %c88 = arith.constant 88 : index
    %c0_26 = arith.constant 0 : index
    %23 = vector.load %arg6[%c88, %c0_26] : memref<200x192xf32, #tpu.memory_space<vmem>>, vector<8x192xf32>
    tpu.vector_store %arg6[%c88, %c0_26], %22 {strides = array<i32>} : memref<200x192xf32, #tpu.memory_space<vmem>>, vector<8x192xf32>,
    %c0_27 = arith.constant 0 : index
    %c34 = arith.constant 34 : index
    %24 = vector.load %arg1[%c0_27, %c34] : memref<8x256xf32, #tpu.memory_space<vmem>>, vector<8x192xf32>
    %c96 = arith.constant 96 : index
    %c0_28 = arith.constant 0 : index
    %25 = vector.load %arg6[%c96, %c0_28] : memref<200x192xf32, #tpu.memory_space<vmem>>, vector<8x192xf32>
    tpu.vector_store %arg6[%c96, %c0_28], %24 {strides = array<i32>} : memref<200x192xf32, #tpu.memory_space<vmem>>, vector<8x192xf32>,
    %c0_29 = arith.constant 0 : index
    %c35 = arith.constant 35 : index
    %26 = vector.load %arg1[%c0_29, %c35] : memref<8x256xf32, #tpu.memory_space<vmem>>, vector<8x192xf32>
    %c104 = arith.constant 104 : index
    %c0_30 = arith.constant 0 : index
    %27 = vector.load %arg6[%c104, %c0_30] : memref<200x192xf32, #tpu.memory_space<vmem>>, vector<8x192xf32>
    tpu.vector_store %arg6[%c104, %c0_30], %26 {strides = array<i32>} : memref<200x192xf32, #tpu.memory_space<vmem>>, vector<8x192xf32>,
    %c0_31 = arith.constant 0 : index
    %c36 = arith.constant 36 : index
    %28 = vector.load %arg1[%c0_31, %c36] : memref<8x256xf32, #tpu.memory_space<vmem>>, vector<8x192xf32>
    %c112 = arith.constant 112 : index
    %c0_32 = arith.constant 0 : index
    %29 = vector.load %arg6[%c112, %c0_32] : memref<200x192xf32, #tpu.memory_space<vmem>>, vector<8x192xf32>
    tpu.vector_store %arg6[%c112, %c0_32], %28 {strides = array<i32>} : memref<200x192xf32, #tpu.memory_space<vmem>>, vector<8x192xf32>,
    %c0_33 = arith.constant 0 : index
    %c48_34 = arith.constant 48 : index
    %30 = vector.load %arg1[%c0_33, %c48_34] : memref<8x256xf32, #tpu.memory_space<vmem>>, vector<8x192xf32>
    %c120 = arith.constant 120 : index
    %c0_35 = arith.constant 0 : index
    %31 = vector.load %arg6[%c120, %c0_35] : memref<200x192xf32, #tpu.memory_space<vmem>>, vector<8x192xf32>
    tpu.vector_store %arg6[%c120, %c0_35], %30 {strides = array<i32>} : memref<200x192xf32, #tpu.memory_space<vmem>>, vector<8x192xf32>,
    %c0_36 = arith.constant 0 : index
    %c49 = arith.constant 49 : index
    %32 = vector.load %arg1[%c0_36, %c49] : memref<8x256xf32, #tpu.memory_space<vmem>>, vector<8x192xf32>
    %c128 = arith.constant 128 : index
    %c0_37 = arith.constant 0 : index
    %33 = vector.load %arg6[%c128, %c0_37] : memref<200x192xf32, #tpu.memory_space<vmem>>, vector<8x192xf32>
    tpu.vector_store %arg6[%c128, %c0_37], %32 {strides = array<i32>} : memref<200x192xf32, #tpu.memory_space<vmem>>, vector<8x192xf32>,
    %c0_38 = arith.constant 0 : index
    %c50 = arith.constant 50 : index
    %34 = vector.load %arg1[%c0_38, %c50] : memref<8x256xf32, #tpu.memory_space<vmem>>, vector<8x192xf32>
    %c136 = arith.constant 136 : index
    %c0_39 = arith.constant 0 : index
    %35 = vector.load %arg6[%c136, %c0_39] : memref<200x192xf32, #tpu.memory_space<vmem>>, vector<8x192xf32>
    tpu.vector_store %arg6[%c136, %c0_39], %34 {strides = array<i32>} : memref<200x192xf32, #tpu.memory_space<vmem>>, vector<8x192xf32>,
    %c0_40 = arith.constant 0 : index
    %c51 = arith.constant 51 : index
    %36 = vector.load %arg1[%c0_40, %c51] : memref<8x256xf32, #tpu.memory_space<vmem>>, vector<8x192xf32>
    %c144 = arith.constant 144 : index
    %c0_41 = arith.constant 0 : index
    %37 = vector.load %arg6[%c144, %c0_41] : memref<200x192xf32, #tpu.memory_space<vmem>>, vector<8x192xf32>
    tpu.vector_store %arg6[%c144, %c0_41], %36 {strides = array<i32>} : memref<200x192xf32, #tpu.memory_space<vmem>>, vector<8x192xf32>,
    %c0_42 = arith.constant 0 : index
    %c52 = arith.constant 52 : index
    %38 = vector.load %arg1[%c0_42, %c52] : memref<8x256xf32, #tpu.memory_space<vmem>>, vector<8x192xf32>
    %c152 = arith.constant 152 : index
    %c0_43 = arith.constant 0 : index
    %39 = vector.load %arg6[%c152, %c0_43] : memref<200x192xf32, #tpu.memory_space<vmem>>, vector<8x192xf32>
    tpu.vector_store %arg6[%c152, %c0_43], %38 {strides = array<i32>} : memref<200x192xf32, #tpu.memory_space<vmem>>, vector<8x192xf32>,
    %c0_44 = arith.constant 0 : index
    %c64_45 = arith.constant 64 : index
    %40 = vector.load %arg1[%c0_44, %c64_45] : memref<8x256xf32, #tpu.memory_space<vmem>>, vector<8x192xf32>
    %c160 = arith.constant 160 : index
    %c0_46 = arith.constant 0 : index
    %41 = vector.load %arg6[%c160, %c0_46] : memref<200x192xf32, #tpu.memory_space<vmem>>, vector<8x192xf32>
    tpu.vector_store %arg6[%c160, %c0_46], %40 {strides = array<i32>} : memref<200x192xf32, #tpu.memory_space<vmem>>, vector<8x192xf32>,
    %c0_47 = arith.constant 0 : index
    %c65 = arith.constant 65 : index
    %42 = vector.load %arg1[%c0_47, %c65] : memref<8x256xf32, #tpu.memory_space<vmem>>, vector<8x191xf32>
    %c168 = arith.constant 168 : index
    %c0_48 = arith.constant 0 : index
    %43 = vector.load %arg6[%c168, %c0_48] : memref<200x192xf32, #tpu.memory_space<vmem>>, vector<8x191xf32>
    tpu.vector_store %arg6[%c168, %c0_48], %42 {strides = array<i32>} : memref<200x192xf32, #tpu.memory_space<vmem>>, vector<8x191xf32>,
    %cst = arith.constant 0.000000e+00 : f32
    %44 = vector.broadcast %cst : f32 to vector<8x1xf32>
    %c168_49 = arith.constant 168 : index
    %c191 = arith.constant 191 : index
    %45 = vector.load %arg6[%c168_49, %c191] : memref<200x192xf32, #tpu.memory_space<vmem>>, vector<8x1xf32>
    tpu.vector_store %arg6[%c168_49, %c191], %44 {strides = array<i32>} : memref<200x192xf32, #tpu.memory_space<vmem>>, vector<8x1xf32>,
    %c0_50 = arith.constant 0 : index
    %c66 = arith.constant 66 : index
    %46 = vector.load %arg1[%c0_50, %c66] : memref<8x256xf32, #tpu.memory_space<vmem>>, vector<8x190xf32>
    %c176 = arith.constant 176 : index
    %c0_51 = arith.constant 0 : index
    %47 = vector.load %arg6[%c176, %c0_51] : memref<200x192xf32, #tpu.memory_space<vmem>>, vector<8x190xf32>
    tpu.vector_store %arg6[%c176, %c0_51], %46 {strides = array<i32>} : memref<200x192xf32, #tpu.memory_space<vmem>>, vector<8x190xf32>,
    %cst_52 = arith.constant 0.000000e+00 : f32
    %48 = vector.broadcast %cst_52 : f32 to vector<8x2xf32>
    %c176_53 = arith.constant 176 : index
    %c190 = arith.constant 190 : index
    %49 = vector.load %arg6[%c176_53, %c190] : memref<200x192xf32, #tpu.memory_space<vmem>>, vector<8x2xf32>
    tpu.vector_store %arg6[%c176_53, %c190], %48 {strides = array<i32>} : memref<200x192xf32, #tpu.memory_space<vmem>>, vector<8x2xf32>,
    %c0_54 = arith.constant 0 : index
    %c67 = arith.constant 67 : index
    %50 = vector.load %arg1[%c0_54, %c67] : memref<8x256xf32, #tpu.memory_space<vmem>>, vector<8x189xf32>
    %c184 = arith.constant 184 : index
    %c0_55 = arith.constant 0 : index
    %51 = vector.load %arg6[%c184, %c0_55] : memref<200x192xf32, #tpu.memory_space<vmem>>, vector<8x189xf32>
    tpu.vector_store %arg6[%c184, %c0_55], %50 {strides = array<i32>} : memref<200x192xf32, #tpu.memory_space<vmem>>, vector<8x189xf32>,
    %cst_56 = arith.constant 0.000000e+00 : f32
    %52 = vector.broadcast %cst_56 : f32 to vector<8x3xf32>
    %c184_57 = arith.constant 184 : index
    %c189 = arith.constant 189 : index
    %53 = vector.load %arg6[%c184_57, %c189] : memref<200x192xf32, #tpu.memory_space<vmem>>, vector<8x3xf32>
    tpu.vector_store %arg6[%c184_57, %c189], %52 {strides = array<i32>} : memref<200x192xf32, #tpu.memory_space<vmem>>, vector<8x3xf32>,
    %c0_58 = arith.constant 0 : index
    %c68 = arith.constant 68 : index
    %54 = vector.load %arg1[%c0_58, %c68] : memref<8x256xf32, #tpu.memory_space<vmem>>, vector<8x188xf32>
    %c192 = arith.constant 192 : index
    %c0_59 = arith.constant 0 : index
    %55 = vector.load %arg6[%c192, %c0_59] : memref<200x192xf32, #tpu.memory_space<vmem>>, vector<8x188xf32>
    tpu.vector_store %arg6[%c192, %c0_59], %54 {strides = array<i32>} : memref<200x192xf32, #tpu.memory_space<vmem>>, vector<8x188xf32>,
    %cst_60 = arith.constant 0.000000e+00 : f32
    %56 = vector.broadcast %cst_60 : f32 to vector<8x4xf32>
    %c192_61 = arith.constant 192 : index
    %c188 = arith.constant 188 : index
    %57 = vector.load %arg6[%c192_61, %c188] : memref<200x192xf32, #tpu.memory_space<vmem>>, vector<8x4xf32>
    tpu.vector_store %arg6[%c192_61, %c188], %56 {strides = array<i32>} : memref<200x192xf32, #tpu.memory_space<vmem>>, vector<8x4xf32>,
    %c0_62 = arith.constant 0 : index
    %c0_63 = arith.constant 0 : index
    %58 = vector.load %arg2[%c0_62, %c0_63] : memref<16x200xf32, #tpu.memory_space<vmem>>, vector<16x200xf32>
    %c0_64 = arith.constant 0 : index
    %c0_65 = arith.constant 0 : index
    %59 = vector.load %arg6[%c0_64, %c0_65] : memref<200x192xf32, #tpu.memory_space<vmem>>, vector<200x192xf32>
    %cst_66 = arith.constant dense<0.000000e+00> : vector<16x192xf32>
    %60 = tpu.matmul %58, %59, %cst_66 {dimension_numbers = #tpu.dot_dimension_numbers<[1], [0], [0], [1], [0, 0, 1, 1], [], []>} : vector<16x200xf32>, vector<200x192xf32>, vector<16x192xf32> -> vector<16x192xf32>
    %c0_67 = arith.constant 0 : index
    %c0_68 = arith.constant 0 : index
    %61 = vector.load %arg3[%c0_67, %c0_68] : memref<192x144xf32, #tpu.memory_space<vmem>>, vector<192x144xf32>
    %cst_69 = arith.constant dense<0.000000e+00> : vector<16x144xf32>
    %62 = tpu.matmul %60, %61, %cst_69 {dimension_numbers = #tpu.dot_dimension_numbers<[1], [0], [0], [1], [0, 0, 1, 1], [], []>} : vector<16x192xf32>, vector<192x144xf32>, vector<16x144xf32> -> vector<16x144xf32>
    %c0_70 = arith.constant 0 : index
    %c0_71 = arith.constant 0 : index
    %63 = vector.load %arg4[%c0_70, %c0_71] : memref<16x1xf32, #tpu.memory_space<vmem>>, vector<16x1xf32>
    %64 = vector.broadcast %63 : vector<16x1xf32> to vector<16x144xf32>
    %65 = arith.addf %62, %64 : vector<16x144xf32>
    %c0_72 = arith.constant 0 : index
    %c0_73 = arith.constant 0 : index
    %66 = vector.load %arg5[%c0_72, %c0_73] : memref<16x144xf32, #tpu.memory_space<vmem>>, vector<16x144xf32>
    tpu.vector_store %arg5[%c0_72, %c0_73], %65 {strides = array<i32>} : memref<16x144xf32, #tpu.memory_space<vmem>>, vector<16x144xf32>,
    return
  }
  func.func @transform_0(%arg0: i32) -> (i32, i32) {
    %c0_i32 = arith.constant 0 : i32
    %c0_i32_0 = arith.constant 0 : i32
    %c0_i32_1 = arith.constant 0 : i32
    return %c0_i32, %c0_i32_0 : i32, i32
  }
  func.func @transform_1(%arg0: i32) -> (i32, i32) {
    %c0_i32 = arith.constant 0 : i32
    %c0_i32_0 = arith.constant 0 : i32
    %c0_i32_1 = arith.constant 0 : i32
    return %c0_i32, %c0_i32_0 : i32, i32
  }
  func.func @transform_2(%arg0: i32) -> (i32, i32) {
    %c0_i32 = arith.constant 0 : i32
    %c0_i32_0 = arith.constant 0 : i32
    %c0_i32_1 = arith.constant 0 : i32
    return %c0_i32, %c0_i32_0 : i32, i32
  }
  func.func @transform_3(%arg0: i32) -> (i32, i32) {
    %c0_i32 = arith.constant 0 : i32
    %c0_i32_0 = arith.constant 0 : i32
    %c0_i32_1 = arith.constant 0 : i32
    return %c0_i32, %c0_i32_0 : i32, i32
  }
  func.func @transform_4(%arg0: i32) -> (i32, i32) {
    %c0_i32 = arith.constant 0 : i32
    %c0_i32_0 = arith.constant 0 : i32
    %c0_i32_1 = arith.constant 0 : i32
    return %c0_i32, %c0_i32_0 : i32, i32
  }
}

</mosaic_0001>

<llo_original>
// kernel: tpu_custom_call.1
$region0: #{tpu_custom_call.1}
  #allocation0 [shape = 'u32[]', space=smem, size = 0x4, offset = 0x4, fixed_abs, tag = 'smem constant byte address 0x4 - core index']
  #allocation1 [shape = 'u32[144,128]{1,0:T(1,128)}', space=vmem, size = 0x12000, scoped, tag = 'internal scratch']
  #allocation2 [shape = 'f32[200,192]{1,0:T(8,128)}', space=vmem, size = 0x32000, scoped, tag = 'scratch operand']
  %s0 = inlined_call_operand.vmem [shape: f32[8,256], index: 0, kind: input, shape index: {}]
  %s1 = inlined_call_operand.vmem [shape: f32[16,200], index: 1, kind: input, shape index: {}]
  %s2 = inlined_call_operand.vmem [shape: f32[192,144], index: 2, kind: input, shape index: {}]
  %s3 = inlined_call_operand.vmem [shape: f32[16,1], index: 3, kind: input, shape index: {}]
  %s4 = inlined_call_operand.hbm [shape: f32[16,144], index: 4, kind: output, shape index: {}]
  %s5 = sld [smem:[#allocation0]]
  $region26: #{tpu_custom_call.1} parent=0
    _
  %s7 = ssub.s32 1, %s5
  %s8 = scalar_select 0, %s7, %s5
  $region1: #{tpu_custom_call.1} parent=0
    #allocation3 [shape = 'u8[16384]{0}', space=vmem, size = 0x4000, scoped, tag = 'output window, operand 0, single buffered']
    #allocation4 [shape = 's32[1]{0}', space=sflag, size = 0x4, scoped, tag = 'scoped memory for tpu_custom_call.1']
    %9 = vsyncpa [#allocation4], 0
    // Predicated region
    $region2: #{tpu_custom_call.1} parent=1 // pred_check
      _
    $region3: #{tpu_custom_call.1} parent=1 // pred_check_branch
      %11 = sbr.rel (0) target = $region5
    $region4: #{tpu_custom_call.1} parent=1 // pred_region
      _
    $region5: #{tpu_custom_call.1} parent=1 // pred_fallthru
      _
    // Predicated region
    $region6: #{tpu_custom_call.1} parent=1 // pred_check
      _
    $region7: #{tpu_custom_call.1} parent=1 // pred_check_branch
      %13 = sbr.rel (0) target = $region9
    $region8: #{tpu_custom_call.1} parent=1 // pred_region
      _
    $region9: #{tpu_custom_call.1} parent=1 // pred_fallthru
      _
    // Predicated region
    $region10: #{tpu_custom_call.1} parent=1 // pred_check
      _
    $region11: #{tpu_custom_call.1} parent=1 // pred_check_branch
      %15 = sbr.rel (0) target = $region13
    $region12: #{tpu_custom_call.1} parent=1 // pred_region
      _
    $region13: #{tpu_custom_call.1} parent=1 // pred_fallthru
      _
    // Predicated region
    $region14: #{tpu_custom_call.1} parent=1 // pred_check
      _
    $region15: #{tpu_custom_call.1} parent=1 // pred_check_branch
      %17 = sbr.rel (0) target = $region17
    $region16: #{tpu_custom_call.1} parent=1 // pred_region
      _
    $region17: #{tpu_custom_call.1} parent=1 // pred_fallthru
      _
    %v18 = vld [vmem:[%s0] sm:$0xff]
    %v19 = vld [vmem:[%s0 + $0x8] sm:$0xff]
    %20 = vst [vmem:[#allocation2] sm:$0xff] %v18
    %vm21 = vcmask 523264
    %22 = vst.msk [vmem:[#allocation2 + $0x8] sm:$0xff] %vm21, %v19
    %v23 = vld [vmem:[%s0] sm:$0xff]
    %v24 = vld [vmem:[%s0 + $0x8] sm:$0xff]
    %27 = vrot.lane.b32.xlu0 %v23, 127
    %v28 = vpop.permute.xlu0 %27
    %29 = vrot.lane.b32.xlu0 %v24, 127
    %v30 = vpop.permute.xlu0 %29
    %vm31 = vcmask 1039360
    %v32 = vsel %vm31, %v28, %v30
    %35 = vst [vmem:[#allocation2 + $0x10] sm:$0xff] %v32
    %36 = vst.msk [vmem:[#allocation2 + $0x18] sm:$0xff] %vm21, %v30
    %v37 = vld [vmem:[%s0] sm:$0xff]
    %v38 = vld [vmem:[%s0 + $0x8] sm:$0xff]
    %41 = vrot.lane.b32.xlu0 %v37, 126
    %v42 = vpop.permute.xlu0 %41
    %43 = vrot.lane.b32.xlu0 %v38, 126
    %v44 = vpop.permute.xlu0 %43
    %vm45 = vcmask 1031168
    %v46 = vsel %vm45, %v42, %v44
    %49 = vst [vmem:[#allocation2 + $0x20] sm:$0xff] %v46
    %50 = vst.msk [vmem:[#allocation2 + $0x28] sm:$0xff] %vm21, %v44
    %v51 = vld [vmem:[%s0] sm:$0xff]
    %v52 = vld [vmem:[%s0 + $0x8] sm:$0xff]
    %55 = vrot.lane.b32.xlu0 %v51, 125
    %v56 = vpop.permute.xlu0 %55
    %57 = vrot.lane.b32.xlu0 %v52, 125
    %v58 = vpop.permute.xlu0 %57
    %vm59 = vcmask 1022976
    %v60 = vsel %vm59, %v56, %v58
    %63 = vst [vmem:[#allocation2 + $0x30] sm:$0xff] %v60
    %64 = vst.msk [vmem:[#allocation2 + $0x38] sm:$0xff] %vm21, %v58
    %v65 = vld [vmem:[%s0] sm:$0xff]
    %v66 = vld [vmem:[%s0 + $0x8] sm:$0xff]
    %69 = vrot.lane.b32.xlu0 %v65, 124
    %v70 = vpop.permute.xlu0 %69
    %71 = vrot.lane.b32.xlu0 %v66, 124
    %v72 = vpop.permute.xlu0 %71
    %vm73 = vcmask 1014784
    %v74 = vsel %vm73, %v70, %v72
    %77 = vst [vmem:[#allocation2 + $0x40] sm:$0xff] %v74
    %78 = vst.msk [vmem:[#allocation2 + $0x48] sm:$0xff] %vm21, %v72
    %v79 = vld [vmem:[%s0] sm:$0xff]
    %v80 = vld [vmem:[%s0 + $0x8] sm:$0xff]
    %83 = vrot.lane.b32.xlu0 %v79, 112
    %v84 = vpop.permute.xlu0 %83
    %85 = vrot.lane.b32.xlu0 %v80, 112
    %v86 = vpop.permute.xlu0 %85
    %vm87 = vcmask 916480
    %v88 = vsel %vm87, %v84, %v86
    %91 = vst [vmem:[#allocation2 + $0x50] sm:$0xff] %v88
    %92 = vst.msk [vmem:[#allocation2 + $0x58] sm:$0xff] %vm21, %v86
    %v93 = vld [vmem:[%s0] sm:$0xff]
    %v94 = vld [vmem:[%s0 + $0x8] sm:$0xff]
    %97 = vrot.lane.b32.xlu0 %v93, 111
    %v98 = vpop.permute.xlu0 %97
    %99 = vrot.lane.b32.xlu0 %v94, 111
    %v100 = vpop.permute.xlu0 %99
    %vm101 = vcmask 908288
    %v102 = vsel %vm101, %v98, %v100
    %105 = vst [vmem:[#allocation2 + $0x60] sm:$0xff] %v102
    %106 = vst.msk [vmem:[#allocation2 + $0x68] sm:$0xff] %vm21, %v100
    %v107 = vld [vmem:[%s0] sm:$0xff]
    %v108 = vld [vmem:[%s0 + $0x8] sm:$0xff]
    %111 = vrot.lane.b32.xlu0 %v107, 110
    %v112 = vpop.permute.xlu0 %111
    %113 = vrot.lane.b32.xlu0 %v108, 110
    %v114 = vpop.permute.xlu0 %113
    %vm115 = vcmask 900096
    %v116 = vsel %vm115, %v112, %v114
    %119 = vst [vmem:[#allocation2 + $0x70] sm:$0xff] %v116
    %120 = vst.msk [vmem:[#allocation2 + $0x78] sm:$0xff] %vm21, %v114
    %v121 = vld [vmem:[%s0] sm:$0xff]
    %v122 = vld [vmem:[%s0 + $0x8] sm:$0xff]
    %125 = vrot.lane.b32.xlu0 %v121, 109
    %v126 = vpop.permute.xlu0 %125
    %127 = vrot.lane.b32.xlu0 %v122, 109
    %v128 = vpop.permute.xlu0 %127
    %vm129 = vcmask 891904
    %v130 = vsel %vm129, %v126, %v128
    %133 = vst [vmem:[#allocation2 + $0x80] sm:$0xff] %v130
    %134 = vst.msk [vmem:[#allocation2 + $0x88] sm:$0xff] %vm21, %v128
    %v135 = vld [vmem:[%s0] sm:$0xff]
    %v136 = vld [vmem:[%s0 + $0x8] sm:$0xff]
    %139 = vrot.lane.b32.xlu0 %v135, 108
    %v140 = vpop.permute.xlu0 %139
    %141 = vrot.lane.b32.xlu0 %v136, 108
    %v142 = vpop.permute.xlu0 %141
    %vm143 = vcmask 883712
    %v144 = vsel %vm143, %v140, %v142
    %147 = vst [vmem:[#allocation2 + $0x90] sm:$0xff] %v144
    %148 = vst.msk [vmem:[#allocation2 + $0x98] sm:$0xff] %vm21, %v142
    %v149 = vld [vmem:[%s0] sm:$0xff]
    %v150 = vld [vmem:[%s0 + $0x8] sm:$0xff]
    %153 = vrot.lane.b32.xlu0 %v149, 96
    %v154 = vpop.permute.xlu0 %153
    %155 = vrot.lane.b32.xlu0 %v150, 96
    %v156 = vpop.permute.xlu0 %155
    %vm157 = vcmask 785408
    %v158 = vsel %vm157, %v154, %v156
    %161 = vst [vmem:[#allocation2 + $0xa0] sm:$0xff] %v158
    %162 = vst.msk [vmem:[#allocation2 + $0xa8] sm:$0xff] %vm21, %v156
    %v163 = vld [vmem:[%s0] sm:$0xff]
    %v164 = vld [vmem:[%s0 + $0x8] sm:$0xff]
    %167 = vrot.lane.b32.xlu0 %v163, 95
    %v168 = vpop.permute.xlu0 %167
    %169 = vrot.lane.b32.xlu0 %v164, 95
    %v170 = vpop.permute.xlu0 %169
    %vm171 = vcmask 777216
    %v172 = vsel %vm171, %v168, %v170
    %175 = vst [vmem:[#allocation2 + $0xb0] sm:$0xff] %v172
    %176 = vst.msk [vmem:[#allocation2 + $0xb8] sm:$0xff] %vm21, %v170
    %v177 = vld [vmem:[%s0] sm:$0xff]
    %v178 = vld [vmem:[%s0 + $0x8] sm:$0xff]
    %181 = vrot.lane.b32.xlu0 %v177, 94
    %v182 = vpop.permute.xlu0 %181
    %183 = vrot.lane.b32.xlu0 %v178, 94
    %v184 = vpop.permute.xlu0 %183
    %vm185 = vcmask 769024
    %v186 = vsel %vm185, %v182, %v184
    %189 = vst [vmem:[#allocation2 + $0xc0] sm:$0xff] %v186
    %190 = vst.msk [vmem:[#allocation2 + $0xc8] sm:$0xff] %vm21, %v184
    %v191 = vld [vmem:[%s0] sm:$0xff]
    %v192 = vld [vmem:[%s0 + $0x8] sm:$0xff]
    %195 = vrot.lane.b32.xlu0 %v191, 93
    %v196 = vpop.permute.xlu0 %195
    %197 = vrot.lane.b32.xlu0 %v192, 93
    %v198 = vpop.permute.xlu0 %197
    %vm199 = vcmask 760832
    %v200 = vsel %vm199, %v196, %v198
    %203 = vst [vmem:[#allocation2 + $0xd0] sm:$0xff] %v200
    %204 = vst.msk [vmem:[#allocation2 + $0xd8] sm:$0xff] %vm21, %v198
    %v205 = vld [vmem:[%s0] sm:$0xff]
    %v206 = vld [vmem:[%s0 + $0x8] sm:$0xff]
    %209 = vrot.lane.b32.xlu0 %v205, 92
    %v210 = vpop.permute.xlu0 %209
    %211 = vrot.lane.b32.xlu0 %v206, 92
    %v212 = vpop.permute.xlu0 %211
    %vm213 = vcmask 752640
    %v214 = vsel %vm213, %v210, %v212
    %217 = vst [vmem:[#allocation2 + $0xe0] sm:$0xff] %v214
    %218 = vst.msk [vmem:[#allocation2 + $0xe8] sm:$0xff] %vm21, %v212
    %v219 = vld [vmem:[%s0] sm:$0xff]
    %v220 = vld [vmem:[%s0 + $0x8] sm:$0xff]
    %223 = vrot.lane.b32.xlu0 %v219, 80
    %v224 = vpop.permute.xlu0 %223
    %225 = vrot.lane.b32.xlu0 %v220, 80
    %v226 = vpop.permute.xlu0 %225
    %vm227 = vcmask 654336
    %v228 = vsel %vm227, %v224, %v226
    %231 = vst [vmem:[#allocation2 + $0xf0] sm:$0xff] %v228
    %232 = vst.msk [vmem:[#allocation2 + $0xf8] sm:$0xff] %vm21, %v226
    %v233 = vld [vmem:[%s0] sm:$0xff]
    %v234 = vld [vmem:[%s0 + $0x8] sm:$0xff]
    %237 = vrot.lane.b32.xlu0 %v233, 79
    %v238 = vpop.permute.xlu0 %237
    %239 = vrot.lane.b32.xlu0 %v234, 79
    %v240 = vpop.permute.xlu0 %239
    %vm241 = vcmask 646144
    %v242 = vsel %vm241, %v238, %v240
    %245 = vst [vmem:[#allocation2 + $0x100] sm:$0xff] %v242
    %246 = vst.msk [vmem:[#allocation2 + $0x108] sm:$0xff] %vm21, %v240
    %v247 = vld [vmem:[%s0] sm:$0xff]
    %v248 = vld [vmem:[%s0 + $0x8] sm:$0xff]
    %251 = vrot.lane.b32.xlu0 %v247, 78
    %v252 = vpop.permute.xlu0 %251
    %253 = vrot.lane.b32.xlu0 %v248, 78
    %v254 = vpop.permute.xlu0 %253
    %vm255 = vcmask 637952
    %v256 = vsel %vm255, %v252, %v254
    %259 = vst [vmem:[#allocation2 + $0x110] sm:$0xff] %v256
    %260 = vst.msk [vmem:[#allocation2 + $0x118] sm:$0xff] %vm21, %v254
    %v261 = vld [vmem:[%s0] sm:$0xff]
    %v262 = vld [vmem:[%s0 + $0x8] sm:$0xff]
    %265 = vrot.lane.b32.xlu0 %v261, 77
    %v266 = vpop.permute.xlu0 %265
    %267 = vrot.lane.b32.xlu0 %v262, 77
    %v268 = vpop.permute.xlu0 %267
    %vm269 = vcmask 629760
    %v270 = vsel %vm269, %v266, %v268
    %273 = vst [vmem:[#allocation2 + $0x120] sm:$0xff] %v270
    %274 = vst.msk [vmem:[#allocation2 + $0x128] sm:$0xff] %vm21, %v268
    %v275 = vld [vmem:[%s0] sm:$0xff]
    %v276 = vld [vmem:[%s0 + $0x8] sm:$0xff]
    %279 = vrot.lane.b32.xlu0 %v275, 76
    %v280 = vpop.permute.xlu0 %279
    %281 = vrot.lane.b32.xlu0 %v276, 76
    %v282 = vpop.permute.xlu0 %281
    %vm283 = vcmask 621568
    %v284 = vsel %vm283, %v280, %v282
    %287 = vst [vmem:[#allocation2 + $0x130] sm:$0xff] %v284
    %288 = vst.msk [vmem:[#allocation2 + $0x138] sm:$0xff] %vm21, %v282
    %v289 = vld [vmem:[%s0] sm:$0xff]
    %v290 = vld [vmem:[%s0 + $0x8] sm:$0xff]
    %293 = vrot.lane.b32.xlu0 %v289, 64
    %v294 = vpop.permute.xlu0 %293
    %295 = vrot.lane.b32.xlu0 %v290, 64
    %v296 = vpop.permute.xlu0 %295
    %v297 = vsel %vm21, %v294, %v296
    %300 = vst [vmem:[#allocation2 + $0x140] sm:$0xff] %v297
    %301 = vst.msk [vmem:[#allocation2 + $0x148] sm:$0xff] %vm21, %v296
    %v302 = vld [vmem:[%s0] sm:$0xff]
    %v303 = vld [vmem:[%s0 + $0x8] sm:$0xff]
    %306 = vrot.lane.b32.xlu0 %v302, 63
    %v307 = vpop.permute.xlu0 %306
    %308 = vrot.lane.b32.xlu0 %v303, 63
    %v309 = vpop.permute.xlu0 %308
    %vm310 = vcmask 515072
    %v311 = vsel %vm310, %v307, %v309
    %314 = vst [vmem:[#allocation2 + $0x150] sm:$0xff] %v311
    %315 = vst.msk [vmem:[#allocation2 + $0x158] sm:$0xff] %vm310, %v309
    %vm316 = vcmask 523768
    %317 = vst.msk [vmem:[#allocation2 + $0x158] sm:$0xff] %vm316, 0.0
    %v318 = vld [vmem:[%s0] sm:$0xff]
    %v319 = vld [vmem:[%s0 + $0x8] sm:$0xff]
    %322 = vrot.lane.b32.xlu0 %v318, 62
    %v323 = vpop.permute.xlu0 %322
    %324 = vrot.lane.b32.xlu0 %v319, 62
    %v325 = vpop.permute.xlu0 %324
    %vm326 = vcmask 506880
    %v327 = vsel %vm326, %v323, %v325
    %330 = vst [vmem:[#allocation2 + $0x160] sm:$0xff] %v327
    %331 = vst.msk [vmem:[#allocation2 + $0x168] sm:$0xff] %vm326, %v325
    %vm332 = vcmask 523760
    %333 = vst.msk [vmem:[#allocation2 + $0x168] sm:$0xff] %vm332, 0.0
    %v334 = vld [vmem:[%s0] sm:$0xff]
    %v335 = vld [vmem:[%s0 + $0x8] sm:$0xff]
    %338 = vrot.lane.b32.xlu0 %v334, 61
    %v339 = vpop.permute.xlu0 %338
    %340 = vrot.lane.b32.xlu0 %v335, 61
    %v341 = vpop.permute.xlu0 %340
    %vm342 = vcmask 498688
    %v343 = vsel %vm342, %v339, %v341
    %346 = vst [vmem:[#allocation2 + $0x170] sm:$0xff] %v343
    %347 = vst.msk [vmem:[#allocation2 + $0x178] sm:$0xff] %vm342, %v341
    %vm348 = vcmask 523752
    %349 = vst.msk [vmem:[#allocation2 + $0x178] sm:$0xff] %vm348, 0.0
    %v350 = vld [vmem:[%s0] sm:$0xff]
    %v351 = vld [vmem:[%s0 + $0x8] sm:$0xff]
    %354 = vrot.lane.b32.xlu0 %v350, 60
    %v355 = vpop.permute.xlu0 %354
    %356 = vrot.lane.b32.xlu0 %v351, 60
    %v357 = vpop.permute.xlu0 %356
    %vm358 = vcmask 490496
    %v359 = vsel %vm358, %v355, %v357
    %362 = vst [vmem:[#allocation2 + $0x180] sm:$0xff] %v359
    %363 = vst.msk [vmem:[#allocation2 + $0x188] sm:$0xff] %vm358, %v357
    %vm364 = vcmask 523744
    %365 = vst.msk [vmem:[#allocation2 + $0x188] sm:$0xff] %vm364, 0.0
    %v366 = vld [vmem:[%s1] sm:$0xff]
    %v367 = vld [vmem:[%s1 + $0x8] sm:$0xff]
    %v368 = vld [vmem:[%s1 + $0x10] sm:$0xff]
    %v369 = vld [vmem:[%s1 + $0x18] sm:$0xff]
    %v370 = vld [vmem:[#allocation2] sm:$0xff]
    %v371 = vld [vmem:[#allocation2 + $0x8] sm:$0xff]
    %v372 = vld [vmem:[#allocation2 + $0x10] sm:$0xff]
    %v373 = vld [vmem:[#allocation2 + $0x18] sm:$0xff]
    %v374 = vld [vmem:[#allocation2 + $0x20] sm:$0xff]
    %v375 = vld [vmem:[#allocation2 + $0x28] sm:$0xff]
    %v376 = vld [vmem:[#allocation2 + $0x30] sm:$0xff]
    %v377 = vld [vmem:[#allocation2 + $0x38] sm:$0xff]
    %v378 = vld [vmem:[#allocation2 + $0x40] sm:$0xff]
    %v379 = vld [vmem:[#allocation2 + $0x48] sm:$0xff]
    %v380 = vld [vmem:[#allocation2 + $0x50] sm:$0xff]
    %v381 = vld [vmem:[#allocation2 + $0x58] sm:$0xff]
    %v382 = vld [vmem:[#allocation2 + $0x60] sm:$0xff]
    %v383 = vld [vmem:[#allocation2 + $0x68] sm:$0xff]
    %v384 = vld [vmem:[#allocation2 + $0x70] sm:$0xff]
    %v385 = vld [vmem:[#allocation2 + $0x78] sm:$0xff]
    %v386 = vld [vmem:[#allocation2 + $0x80] sm:$0xff]
    %v387 = vld [vmem:[#allocation2 + $0x88] sm:$0xff]
    %v388 = vld [vmem:[#allocation2 + $0x90] sm:$0xff]
    %v389 = vld [vmem:[#allocation2 + $0x98] sm:$0xff]
    %v390 = vld [vmem:[#allocation2 + $0xa0] sm:$0xff]
    %v391 = vld [vmem:[#allocation2 + $0xa8] sm:$0xff]
    %v392 = vld [vmem:[#allocation2 + $0xb0] sm:$0xff]
    %v393 = vld [vmem:[#allocation2 + $0xb8] sm:$0xff]
    %v394 = vld [vmem:[#allocation2 + $0xc0] sm:$0xff]
    %v395 = vld [vmem:[#allocation2 + $0xc8] sm:$0xff]
    %v396 = vld [vmem:[#allocation2 + $0xd0] sm:$0xff]
    %v397 = vld [vmem:[#allocation2 + $0xd8] sm:$0xff]
    %v398 = vld [vmem:[#allocation2 + $0xe0] sm:$0xff]
    %v399 = vld [vmem:[#allocation2 + $0xe8] sm:$0xff]
    %v400 = vld [vmem:[#allocation2 + $0xf0] sm:$0xff]
    %v401 = vld [vmem:[#allocation2 + $0xf8] sm:$0xff]
    %v402 = vld [vmem:[#allocation2 + $0x100] sm:$0xff]
    %v403 = vld [vmem:[#allocation2 + $0x108] sm:$0xff]
    %v404 = vld [vmem:[#allocation2 + $0x110] sm:$0xff]
    %v405 = vld [vmem:[#allocation2 + $0x118] sm:$0xff]
    %v406 = vld [vmem:[#allocation2 + $0x120] sm:$0xff]
    %v407 = vld [vmem:[#allocation2 + $0x128] sm:$0xff]
    %v408 = vld [vmem:[#allocation2 + $0x130] sm:$0xff]
    %v409 = vld [vmem:[#allocation2 + $0x138] sm:$0xff]
    %v410 = vld [vmem:[#allocation2 + $0x140] sm:$0xff]
    %v411 = vld [vmem:[#allocation2 + $0x148] sm:$0xff]
    %v412 = vld [vmem:[#allocation2 + $0x150] sm:$0xff]
    %v413 = vld [vmem:[#allocation2 + $0x158] sm:$0xff]
    %v414 = vld [vmem:[#allocation2 + $0x160] sm:$0xff]
    %v415 = vld [vmem:[#allocation2 + $0x168] sm:$0xff]
    %v416 = vld [vmem:[#allocation2 + $0x170] sm:$0xff]
    %v417 = vld [vmem:[#allocation2 + $0x178] sm:$0xff]
    %v418 = vld [vmem:[#allocation2 + $0x180] sm:$0xff]
    %v419 = vld [vmem:[#allocation2 + $0x188] sm:$0xff]
    %vm420 = vcmask 588800
    %v422 = vsel %vm420, %v367, 0
    %v425 = vsel %vm420, %v369, 0
    %427 = vmatprep.subr.mxu0 %v371
    %428 = vmatpush1.msra.mxu0 %v370
    %429 = vmatprep.subr.mxu0 %v373
    %430 = vmatpush1.msra.mxu0 %v372
    %431 = vmatprep.subr.mxu0 %v375
    %432 = vmatpush1.msra.mxu0 %v374
    %433 = vmatprep.subr.mxu0 %v377
    %434 = vmatpush1.msra.mxu0 %v376
    %435 = vmatprep.subr.mxu0 %v379
    %436 = vmatpush1.msra.mxu0 %v378
    %437 = vmatprep.subr.mxu0 %v381
    %438 = vmatpush1.msra.mxu0 %v380
    %439 = vmatprep.subr.mxu0 %v383
    %440 = vmatpush1.msra.mxu0 %v382
    %441 = vmatprep.subr.mxu0 %v385
    %442 = vmatpush1.msra.mxu0 %v384
    %443 = vmatprep.subr.mxu0 %v387
    %444 = vmatpush1.msra.mxu0 %v386
    %445 = vmatprep.subr.mxu0 %v389
    %446 = vmatpush1.msra.mxu0 %v388
    %447 = vmatprep.subr.mxu0 %v391
    %448 = vmatpush1.msra.mxu0 %v390
    %449 = vmatprep.subr.mxu0 %v393
    %450 = vmatpush1.msra.mxu0 %v392
    %451 = vmatprep.subr.mxu0 %v395
    %452 = vmatpush1.msra.mxu0 %v394
    %453 = vmatprep.subr.mxu0 %v397
    %454 = vmatpush1.msra.mxu0 %v396
    %455 = vmatprep.subr.mxu0 %v399
    %456 = vmatpush1.msra.mxu0 %v398
    %457 = vmatprep.subr.mxu0 %v401
    %458 = vmatpush1.msra.mxu0 %v400
    %459 = vmatprep.subr.mxu0 %v403
    %460 = vmatpush1.msra.mxu0 %v402
    %461 = vmatprep.subr.mxu0 %v405
    %462 = vmatpush1.msra.mxu0 %v404
    %463 = vmatprep.subr.mxu0 %v407
    %464 = vmatpush1.msra.mxu0 %v406
    %465 = vmatprep.subr.mxu0 %v409
    %466 = vmatpush1.msra.mxu0 %v408
    %467 = vmatprep.subr.mxu0 %v411
    %468 = vmatpush1.msra.mxu0 %v410
    %469 = vmatprep.subr.mxu0 %v413
    %470 = vmatpush1.msra.mxu0 %v412
    %471 = vmatprep.subr.mxu0 %v415
    %472 = vmatpush1.msra.mxu0 %v414
    %473 = vmatprep.subr.mxu0 %v417
    %474 = vmatpush1.msra.mxu0 %v416
    %475 = vmatprep.subr.mxu0 %v419
    %476 = vmatpush1.msra.mxu0 %v418
    %477 = vmatprep.subr.mxu0 0.0
    %478 = vmatpush1.msra.mxu0 0.0
    %479 = vmatprep.subr.mxu0 0.0
    %480 = vmatpush1.msra.mxu0 0.0
    %481 = vmatprep.subr.mxu0 0.0
    %482 = vmatpush1.msra.mxu0 0.0
    %483 = vmatprep.subr.mxu0 0.0
    %484 = vmatpush1.msra.mxu0 0.0
    %485 = vmatprep.subr.mxu0 0.0
    %486 = vmatpush1.msra.mxu0 0.0
    %487 = vmatprep.subr.mxu0 0.0
    %488 = vmatpush1.msra.mxu0 0.0
    %489 = vmatprep.subr.mxu0 0.0
    %490 = vmatpush1.msra.mxu0 0.0
    %491 = vmatprep.mubr.f32.mxu0 %v422
    %492 = vmatmul.mubr.f32.gmra.mrb[0].mxu0 %v366
    %v493 = vpop.f32.mrb[0].mxu0
    %v494 = vadd.f32 0.0, %v493
    %v495 = vpop.f32.mrb[0].mxu0
    %v496 = vadd.f32 0.0, %v495
    %497 = vmatprep.mubr.f32.mxu0 %v425
    %498 = vmatmul.mubr.f32.gmra.mrb[0].mxu0 %v368
    %v499 = vpop.f32.mrb[0].mxu0
    %v500 = vadd.f32 0.0, %v499
    %v501 = vpop.f32.mrb[0].mxu0
    %v502 = vadd.f32 0.0, %v501
    %503 = vdwg.mxu0
    %v504 = vld [vmem:[%s2] sm:$0xff]
    %v505 = vld [vmem:[%s2 + $0x8] sm:$0xff]
    %v506 = vld [vmem:[%s2 + $0x10] sm:$0xff]
    %v507 = vld [vmem:[%s2 + $0x18] sm:$0xff]
    %v508 = vld [vmem:[%s2 + $0x20] sm:$0xff]
    %v509 = vld [vmem:[%s2 + $0x28] sm:$0xff]
    %v510 = vld [vmem:[%s2 + $0x30] sm:$0xff]
    %v511 = vld [vmem:[%s2 + $0x38] sm:$0xff]
    %v512 = vld [vmem:[%s2 + $0x40] sm:$0xff]
    %v513 = vld [vmem:[%s2 + $0x48] sm:$0xff]
    %v514 = vld [vmem:[%s2 + $0x50] sm:$0xff]
    %v515 = vld [vmem:[%s2 + $0x58] sm:$0xff]
    %v516 = vld [vmem:[%s2 + $0x60] sm:$0xff]
    %v517 = vld [vmem:[%s2 + $0x68] sm:$0xff]
    %v518 = vld [vmem:[%s2 + $0x70] sm:$0xff]
    %v519 = vld [vmem:[%s2 + $0x78] sm:$0xff]
    %v520 = vld [vmem:[%s2 + $0x80] sm:$0xff]
    %v521 = vld [vmem:[%s2 + $0x88] sm:$0xff]
    %v522 = vld [vmem:[%s2 + $0x90] sm:$0xff]
    %v523 = vld [vmem:[%s2 + $0x98] sm:$0xff]
    %v524 = vld [vmem:[%s2 + $0xa0] sm:$0xff]
    %v525 = vld [vmem:[%s2 + $0xa8] sm:$0xff]
    %v526 = vld [vmem:[%s2 + $0xb0] sm:$0xff]
    %v527 = vld [vmem:[%s2 + $0xb8] sm:$0xff]
    %v528 = vld [vmem:[%s2 + $0xc0] sm:$0xff]
    %v529 = vld [vmem:[%s2 + $0xc8] sm:$0xff]
    %v530 = vld [vmem:[%s2 + $0xd0] sm:$0xff]
    %v531 = vld [vmem:[%s2 + $0xd8] sm:$0xff]
    %v532 = vld [vmem:[%s2 + $0xe0] sm:$0xff]
    %v533 = vld [vmem:[%s2 + $0xe8] sm:$0xff]
    %v534 = vld [vmem:[%s2 + $0xf0] sm:$0xff]
    %v535 = vld [vmem:[%s2 + $0xf8] sm:$0xff]
    %v536 = vld [vmem:[%s2 + $0x100] sm:$0xff]
    %v537 = vld [vmem:[%s2 + $0x108] sm:$0xff]
    %v538 = vld [vmem:[%s2 + $0x110] sm:$0xff]
    %v539 = vld [vmem:[%s2 + $0x118] sm:$0xff]
    %v540 = vld [vmem:[%s2 + $0x120] sm:$0xff]
    %v541 = vld [vmem:[%s2 + $0x128] sm:$0xff]
    %v542 = vld [vmem:[%s2 + $0x130] sm:$0xff]
    %v543 = vld [vmem:[%s2 + $0x138] sm:$0xff]
    %v544 = vld [vmem:[%s2 + $0x140] sm:$0xff]
    %v545 = vld [vmem:[%s2 + $0x148] sm:$0xff]
    %v546 = vld [vmem:[%s2 + $0x150] sm:$0xff]
    %v547 = vld [vmem:[%s2 + $0x158] sm:$0xff]
    %v548 = vld [vmem:[%s2 + $0x160] sm:$0xff]
    %v549 = vld [vmem:[%s2 + $0x168] sm:$0xff]
    %v550 = vld [vmem:[%s2 + $0x170] sm:$0xff]
    %v551 = vld [vmem:[%s2 + $0x178] sm:$0xff]
    %v552 = vld [vmem:[%s3] sm:$0xff]
    %v553 = vld [vmem:[%s3 + $0x8] sm:$0xff]
    %555 = vset.pattern.permute.xlu0 0
    %556 = vperm.xlu0 %555, %v552
    %v557 = vpop.permute.xlu0 %556
    %560 = vset.pattern.permute.xlu0 0
    %561 = vperm.xlu0 %560, %v553
    %v562 = vpop.permute.xlu0 %561
    %v565 = vsel %vm21, %v496, 0
    %v568 = vsel %vm21, %v502, 0
    %570 = vmatprep.subr.mxu0 %v505
    %571 = vmatpush1.msra.mxu0 %v504
    %572 = vmatprep.subr.mxu0 %v507
    %573 = vmatpush1.msra.mxu0 %v506
    %574 = vmatprep.subr.mxu0 %v509
    %575 = vmatpush1.msra.mxu0 %v508
    %576 = vmatprep.subr.mxu0 %v511
    %577 = vmatpush1.msra.mxu0 %v510
    %578 = vmatprep.subr.mxu0 %v513
    %579 = vmatpush1.msra.mxu0 %v512
    %580 = vmatprep.subr.mxu0 %v515
    %581 = vmatpush1.msra.mxu0 %v514
    %582 = vmatprep.subr.mxu0 %v517
    %583 = vmatpush1.msra.mxu0 %v516
    %584 = vmatprep.subr.mxu0 %v519
    %585 = vmatpush1.msra.mxu0 %v518
    %586 = vmatprep.subr.mxu0 %v521
    %587 = vmatpush1.msra.mxu0 %v520
    %588 = vmatprep.subr.mxu0 %v523
    %589 = vmatpush1.msra.mxu0 %v522
    %590 = vmatprep.subr.mxu0 %v525
    %591 = vmatpush1.msra.mxu0 %v524
    %592 = vmatprep.subr.mxu0 %v527
    %593 = vmatpush1.msra.mxu0 %v526
    %594 = vmatprep.subr.mxu0 %v529
    %595 = vmatpush1.msra.mxu0 %v528
    %596 = vmatprep.subr.mxu0 %v531
    %597 = vmatpush1.msra.mxu0 %v530
    %598 = vmatprep.subr.mxu0 %v533
    %599 = vmatpush1.msra.mxu0 %v532
    %600 = vmatprep.subr.mxu0 %v535
    %601 = vmatpush1.msra.mxu0 %v534
    %602 = vmatprep.subr.mxu0 %v537
    %603 = vmatpush1.msra.mxu0 %v536
    %604 = vmatprep.subr.mxu0 %v539
    %605 = vmatpush1.msra.mxu0 %v538
    %606 = vmatprep.subr.mxu0 %v541
    %607 = vmatpush1.msra.mxu0 %v540
    %608 = vmatprep.subr.mxu0 %v543
    %609 = vmatpush1.msra.mxu0 %v542
    %610 = vmatprep.subr.mxu0 %v545
    %611 = vmatpush1.msra.mxu0 %v544
    %612 = vmatprep.subr.mxu0 %v547
    %613 = vmatpush1.msra.mxu0 %v546
    %614 = vmatprep.subr.mxu0 %v549
    %615 = vmatpush1.msra.mxu0 %v548
    %616 = vmatprep.subr.mxu0 %v551
    %617 = vmatpush1.msra.mxu0 %v550
    %618 = vmatprep.subr.mxu0 0.0
    %619 = vmatpush1.msra.mxu0 0.0
    %620 = vmatprep.subr.mxu0 0.0
    %621 = vmatpush1.msra.mxu0 0.0
    %622 = vmatprep.subr.mxu0 0.0
    %623 = vmatpush1.msra.mxu0 0.0
    %624 = vmatprep.subr.mxu0 0.0
    %625 = vmatpush1.msra.mxu0 0.0
    %626 = vmatprep.subr.mxu0 0.0
    %627 = vmatpush1.msra.mxu0 0.0
    %628 = vmatprep.subr.mxu0 0.0
    %629 = vmatpush1.msra.mxu0 0.0
    %630 = vmatprep.subr.mxu0 0.0
    %631 = vmatpush1.msra.mxu0 0.0
    %632 = vmatprep.subr.mxu0 0.0
    %633 = vmatpush1.msra.mxu0 0.0
    %634 = vmatprep.mubr.f32.mxu0 %v565
    %635 = vmatmul.mubr.f32.gmra.mrb[0].mxu0 %v494
    %v636 = vpop.f32.mrb[0].mxu0
    %v637 = vadd.f32 %v557, %v636
    %v638 = vpop.f32.mrb[0].mxu0
    %v639 = vadd.f32 %v557, %v638
    %640 = vmatprep.mubr.f32.mxu0 %v568
    %641 = vmatmul.mubr.f32.gmra.mrb[0].mxu0 %v500
    %v642 = vpop.f32.mrb[0].mxu0
    %v643 = vadd.f32 %v562, %v642
    %v644 = vpop.f32.mrb[0].mxu0
    %v645 = vadd.f32 %v562, %v644
    %646 = vdwg.mxu0
    %647 = vst [vmem:[#allocation3] sm:$0xff] %v637
    %vm648 = vcmask 130048
    %649 = vst.msk [vmem:[#allocation3 + $0x8] sm:$0xff] %vm648, %v639
    %650 = vst [vmem:[#allocation3 + $0x10] sm:$0xff] %v643
    %651 = vst.msk [vmem:[#allocation3 + $0x18] sm:$0xff] %vm648, %v645
    // Predicated region
    $region18: #{tpu_custom_call.1} parent=1 // pred_check
      _
    $region19: #{tpu_custom_call.1} parent=1 // pred_check_branch
      %653 = sbr.rel (0) target = $region21
    $region20: #{tpu_custom_call.1} parent=1 // pred_region
      %s655 = ssub.s32 512, 512
      %656 = vsyncadd [#allocation4], %s655
      %s657 = sshll.u32 [#allocation3], 4
      %s658 = int_to_ptr.vmem [resolvable:$true] %s657
      %663 = dma.vmem_to_hbm [thread:$0]  %s658, 512, %s4, [#allocation4], 256, 256, 16
    $region21: #{tpu_custom_call.1} parent=1 // pred_fallthru
      _
    // Predicated region
    $region22: #{tpu_custom_call.1} parent=1 // pred_check
      _
    $region23: #{tpu_custom_call.1} parent=1 // pred_check_branch
      %665 = sbr.rel (0) target = $region25
    $region24: #{tpu_custom_call.1} parent=1 // pred_region
      %666 = dma.done [#allocation4], 512
    $region25: #{tpu_custom_call.1} parent=1 // pred_fallthru
      _
    %667 = vsyncpa [#allocation4], 1

</llo_original>
